<compile_context>
chip_gen: v7x
topology: tpu7x:2x2x1
jax: 0.10.0
libtpu: 0.0.40
codegen_flags: <defaults>
</compile_context>

<pallas_src>
import functools
import math

import jax
import jax.numpy as jnp
from jax.experimental import pallas as pl
from jax.experimental.pallas import tpu as pltpu

CIN, COUT, KH, KW = 3, 3, 3, 3
KDIM = CIN * KH * KW          # 27 conv taps
KPAD = 32                     # contraction dim padded up (row 27 = bias, 28..31 = 0)
MPAD = 8                      # output-channel dim padded to one full sublane group


def conv_relu_kernel(w_ref, x_ref, o_ref, xcol_ref, *, ips, WP, NOUT):
    # w_ref   : (MPAD, KPAD)       VMEM f32  (kh,kw,ci)-major weights, col KDIM = bias
    # x_ref   : (ips, CIN, PFLAT)  VMEM f32  pre-padded flat images (row stride WP)
    # o_ref   : (MPAD, ips*NOUT)   VMEM f32  lane-dense output block (whole vregs)
    # xcol_ref: (KPAD, ips*NOUT)   VMEM f32  scratch: im2col matrix

    # Constant contraction rows, rewritten every step (cheap: ~2 vreg stores).
    # Do NOT guard on program_id(): under "parallel" on v7x each TensorCore has
    # its own scratch and only one core would see step 0.
    xcol_ref[KDIM:KDIM + 1, :] = jnp.ones((1, ips * NOUT), jnp.float32)       # bias row
    xcol_ref[KDIM + 1:, :] = jnp.zeros((KPAD - KDIM - 1, ips * NOUT), jnp.float32)

    # im2col with (kh, kw, ci)-major rows: each tap copies all CIN channels in a
    # single 3-sublane slice (9 copies per image instead of 27).  Destination
    # column offsets (multiples of NOUT = 384) are 128-lane aligned.
    for n in range(ips):
        for kh in range(KH):
            for kw in range(KW):
                row = (kh * KW + kw) * CIN
                src = kh * WP + kw
                xcol_ref[row:row + CIN, n * NOUT:(n + 1) * NOUT] = \
                    x_ref[n, :, src:src + NOUT]

    # One MXU matmul for all channels / all images in this step; bias folded in.
    acc = jnp.dot(w_ref[...], xcol_ref[...], preferred_element_type=jnp.float32)
    o_ref[...] = jnp.maximum(acc, 0.0)


def _default_images_per_step(n):
    """Whole batch per step on single-core v5e/v6e; split across v7x's 2 cores."""
    try:
        kind = jax.devices()[0].device_kind.lower()
    except Exception:
        kind = ""
    two_core = ("v7" in kind) or ("7x" in kind)
    if two_core and n % 2 == 0 and n >= 2:
        return n // 2
    return n


def conv2d_relu(x, w, b, images_per_step=None):
    """x: (N, CIN, H, W), w: (COUT, CIN, 3, 3), b: (COUT,) -> (N, COUT, H, W)."""
    N, cin, H, W = x.shape
    assert cin == CIN and w.shape == (COUT, CIN, KH, KW) and b.shape == (COUT,)

    # Pad width so every output row band is an exact multiple of 128 lanes
    # (for H=16: WP=24, NOUT=384=3 vregs) -> unmasked stores everywhere.
    step = 128 // math.gcd(H, 128)
    WP = -(-(W + 2) // step) * step
    NOUT = H * WP
    PFLAT = (H + 3) * WP   # +1 extra zero row so flat im2col shifts never read OOB

    ips = images_per_step if images_per_step is not None else _default_images_per_step(N)
    if N % ips:
        ips = N
    num_steps = N // ips

    # Zero padding done once in the wrapper (nanoseconds of HBM traffic),
    # then a metadata-only flatten.
    x_pad = jnp.pad(x.astype(jnp.float32),
                    ((0, 0), (0, 0), (1, 2), (1, WP - W - 1)))
    x_flat = x_pad.reshape(N, CIN, PFLAT)

    # (kh, kw, ci)-major weight matrix with the bias folded into column KDIM.
    w_perm = jnp.transpose(w.astype(jnp.float32), (0, 2, 3, 1)).reshape(COUT, KDIM)
    w_mat = jnp.zeros((MPAD, KPAD), jnp.float32)
    w_mat = w_mat.at[:COUT, :KDIM].set(w_perm)
    w_mat = w_mat.at[:COUT, KDIM].set(b.astype(jnp.float32))

    kernel = functools.partial(conv_relu_kernel, ips=ips, WP=WP, NOUT=NOUT)

    out_flat = pl.pallas_call(
        kernel,
        out_shape=jax.ShapeDtypeStruct((num_steps, MPAD, ips * NOUT), jnp.float32),
        grid_spec=pltpu.PrefetchScalarGridSpec(
            num_scalar_prefetch=0,
            grid=(num_steps,),
            in_specs=[
                pl.BlockSpec((MPAD, KPAD), lambda g: (0, 0)),          # weights+bias
                pl.BlockSpec((ips, CIN, PFLAT), lambda g: (g, 0, 0)),  # padded images
            ],
            out_specs=pl.BlockSpec((pl.Squeezed(), MPAD, ips * NOUT),
                                   lambda g: (g, 0, 0)),
            scratch_shapes=[
                pltpu.VMEM((KPAD, ips * NOUT), jnp.float32),           # im2col matrix
            ],
        ),
        # VMEM use is ~65 KB/step here; no vmem_limit_bytes needed. If H/W ever
        # grow, row-band-tile xcol and set vmem_limit_bytes (v7x: 64 MiB phys).
        compiler_params=pltpu.CompilerParams(
            dimension_semantics=("parallel",)),
    )(w_mat, x_flat)

    # Columns w >= W per row contain wrap-around garbage by construction of the
    # flat im2col shift -- they MUST be stripped here; rows COUT..MPAD-1 are the
    # zero-padded output channels.  Reshape/transpose/slice are tiny HBM ops.
    out = out_flat.reshape(num_steps, MPAD, ips, H, WP)
    out = jnp.transpose(out, (0, 2, 1, 3, 4)).reshape(N, MPAD, H, WP)
    return out[:, :COUT, :, :W]


def reference_conv2d_relu(x, w, b):
    out = jax.lax.conv_general_dilated(
        x, w, window_strides=(1, 1), padding=((1, 1), (1, 1)),
        dimension_numbers=("NCHW", "OIHW", "NCHW"),
        precision=jax.lax.Precision.HIGHEST)
    out = out + b[None, :, None, None]
    return jnp.maximum(out, 0.0)


if __name__ == "__main__":
    key = jax.random.PRNGKey(0)
    kx, kwk, kb = jax.random.split(key, 3)

    # Small shapes consistent with Conv2d(3, 3, 3, 1, 1): batch=2, C=3, spatial=16
    x = jax.random.normal(kx, (2, 3, 16, 16), dtype=jnp.float32)

    # Deterministic parameter init (mimics Conv2d's uniform fan-in scaling).
    fan_in = CIN * KH * KW
    bound = 1.0 / (fan_in ** 0.5)
    w = jax.random.uniform(kwk, (COUT, CIN, KH, KW), jnp.float32, -bound, bound)
    b = jax.random.uniform(kb, (COUT,), jnp.float32, -bound, bound)

    out = jax.block_until_ready(conv2d_relu(x, w, b))
    ref = jax.block_until_ready(reference_conv2d_relu(x, w, b))

    assert out.shape == (2, 3, 16, 16) and out.dtype == jnp.float32
    assert jnp.allclose(out, ref, atol=1e-4, rtol=1e-4), "mismatch vs reference conv"

    print("KERNEL_OK")
</pallas_src>

<mosaic_0001>
module attributes {stable_mosaic.version = 11 : i64} {
  func.func @conv_relu_kernel(%arg0: i32, %arg1: memref<8x32xf32, #tpu.memory_space<vmem>>, %arg2: memref<2x3x456xf32, #tpu.memory_space<vmem>>, %arg3: memref<1x8x768xf32, #tpu.memory_space<vmem>>, %arg4: memref<32x768xf32, #tpu.memory_space<vmem>>) attributes {dimension_semantics = [#tpu.dimension_semantics<parallel>], iteration_bounds = array<i64: 1>, scalar_prefetch = 0 : i64, scratch_operands = 1 : i64, tpu.core_type = #tpu.core_type<tc>, window_params = [{pipeline_mode = #tpu.pipeline_mode<synchronous>, transform_indices = @transform_0, window_bounds = array<i64: 8, 32>}, {transform_indices = @transform_1, window_bounds = array<i64: 2, 3, 456>}, {transform_indices = @transform_2, window_bounds = array<i64: 1, 8, 768>}]} {
    %cst = arith.constant 1.000000e+00 : f32
    %0 = vector.broadcast %cst : f32 to vector<1x768xf32>
    %c27 = arith.constant 27 : index
    %c0 = arith.constant 0 : index
    %1 = vector.load %arg4[%c27, %c0] : memref<32x768xf32, #tpu.memory_space<vmem>>, vector<1x768xf32>
    tpu.vector_store %arg4[%c27, %c0], %0 {strides = array<i32>} : memref<32x768xf32, #tpu.memory_space<vmem>>, vector<1x768xf32>,
    %cst_0 = arith.constant 0.000000e+00 : f32
    %2 = vector.broadcast %cst_0 : f32 to vector<4x768xf32>
    %c28 = arith.constant 28 : index
    %c0_1 = arith.constant 0 : index
    %3 = vector.load %arg4[%c28, %c0_1] : memref<32x768xf32, #tpu.memory_space<vmem>>, vector<4x768xf32>
    tpu.vector_store %arg4[%c28, %c0_1], %2 {strides = array<i32>} : memref<32x768xf32, #tpu.memory_space<vmem>>, vector<4x768xf32>,
    %c0_2 = arith.constant 0 : index
    %c0_3 = arith.constant 0 : index
    %c0_4 = arith.constant 0 : index
    %4 = vector.load %arg2[%c0_2, %c0_3, %c0_4] : memref<2x3x456xf32, #tpu.memory_space<vmem>>, vector<1x3x384xf32>
    %5 = vector.shape_cast %4 : vector<1x3x384xf32> to vector<3x384xf32>
    %c0_5 = arith.constant 0 : index
    %c0_6 = arith.constant 0 : index
    %6 = vector.load %arg4[%c0_5, %c0_6] : memref<32x768xf32, #tpu.memory_space<vmem>>, vector<3x384xf32>
    tpu.vector_store %arg4[%c0_5, %c0_6], %5 {strides = array<i32>} : memref<32x768xf32, #tpu.memory_space<vmem>>, vector<3x384xf32>,
    %c0_7 = arith.constant 0 : index
    %c0_8 = arith.constant 0 : index
    %c1 = arith.constant 1 : index
    %7 = vector.load %arg2[%c0_7, %c0_8, %c1] : memref<2x3x456xf32, #tpu.memory_space<vmem>>, vector<1x3x384xf32>
    %8 = vector.shape_cast %7 : vector<1x3x384xf32> to vector<3x384xf32>
    %c3 = arith.constant 3 : index
    %c0_9 = arith.constant 0 : index
    %9 = vector.load %arg4[%c3, %c0_9] : memref<32x768xf32, #tpu.memory_space<vmem>>, vector<3x384xf32>
    tpu.vector_store %arg4[%c3, %c0_9], %8 {strides = array<i32>} : memref<32x768xf32, #tpu.memory_space<vmem>>, vector<3x384xf32>,
    %c0_10 = arith.constant 0 : index
    %c0_11 = arith.constant 0 : index
    %c2 = arith.constant 2 : index
    %10 = vector.load %arg2[%c0_10, %c0_11, %c2] : memref<2x3x456xf32, #tpu.memory_space<vmem>>, vector<1x3x384xf32>
    %11 = vector.shape_cast %10 : vector<1x3x384xf32> to vector<3x384xf32>
    %c6 = arith.constant 6 : index
    %c0_12 = arith.constant 0 : index
    %12 = vector.load %arg4[%c6, %c0_12] : memref<32x768xf32, #tpu.memory_space<vmem>>, vector<3x384xf32>
    tpu.vector_store %arg4[%c6, %c0_12], %11 {strides = array<i32>} : memref<32x768xf32, #tpu.memory_space<vmem>>, vector<3x384xf32>,
    %c0_13 = arith.constant 0 : index
    %c0_14 = arith.constant 0 : index
    %c24 = arith.constant 24 : index
    %13 = vector.load %arg2[%c0_13, %c0_14, %c24] : memref<2x3x456xf32, #tpu.memory_space<vmem>>, vector<1x3x384xf32>
    %14 = vector.shape_cast %13 : vector<1x3x384xf32> to vector<3x384xf32>
    %c9 = arith.constant 9 : index
    %c0_15 = arith.constant 0 : index
    %15 = vector.load %arg4[%c9, %c0_15] : memref<32x768xf32, #tpu.memory_space<vmem>>, vector<3x384xf32>
    tpu.vector_store %arg4[%c9, %c0_15], %14 {strides = array<i32>} : memref<32x768xf32, #tpu.memory_space<vmem>>, vector<3x384xf32>,
    %c0_16 = arith.constant 0 : index
    %c0_17 = arith.constant 0 : index
    %c25 = arith.constant 25 : index
    %16 = vector.load %arg2[%c0_16, %c0_17, %c25] : memref<2x3x456xf32, #tpu.memory_space<vmem>>, vector<1x3x384xf32>
    %17 = vector.shape_cast %16 : vector<1x3x384xf32> to vector<3x384xf32>
    %c12 = arith.constant 12 : index
    %c0_18 = arith.constant 0 : index
    %18 = vector.load %arg4[%c12, %c0_18] : memref<32x768xf32, #tpu.memory_space<vmem>>, vector<3x384xf32>
    tpu.vector_store %arg4[%c12, %c0_18], %17 {strides = array<i32>} : memref<32x768xf32, #tpu.memory_space<vmem>>, vector<3x384xf32>,
    %c0_19 = arith.constant 0 : index
    %c0_20 = arith.constant 0 : index
    %c26 = arith.constant 26 : index
    %19 = vector.load %arg2[%c0_19, %c0_20, %c26] : memref<2x3x456xf32, #tpu.memory_space<vmem>>, vector<1x3x384xf32>
    %20 = vector.shape_cast %19 : vector<1x3x384xf32> to vector<3x384xf32>
    %c15 = arith.constant 15 : index
    %c0_21 = arith.constant 0 : index
    %21 = vector.load %arg4[%c15, %c0_21] : memref<32x768xf32, #tpu.memory_space<vmem>>, vector<3x384xf32>
    tpu.vector_store %arg4[%c15, %c0_21], %20 {strides = array<i32>} : memref<32x768xf32, #tpu.memory_space<vmem>>, vector<3x384xf32>,
    %c0_22 = arith.constant 0 : index
    %c0_23 = arith.constant 0 : index
    %c48 = arith.constant 48 : index
    %22 = vector.load %arg2[%c0_22, %c0_23, %c48] : memref<2x3x456xf32, #tpu.memory_space<vmem>>, vector<1x3x384xf32>
    %23 = vector.shape_cast %22 : vector<1x3x384xf32> to vector<3x384xf32>
    %c18 = arith.constant 18 : index
    %c0_24 = arith.constant 0 : index
    %24 = vector.load %arg4[%c18, %c0_24] : memref<32x768xf32, #tpu.memory_space<vmem>>, vector<3x384xf32>
    tpu.vector_store %arg4[%c18, %c0_24], %23 {strides = array<i32>} : memref<32x768xf32, #tpu.memory_space<vmem>>, vector<3x384xf32>,
    %c0_25 = arith.constant 0 : index
    %c0_26 = arith.constant 0 : index
    %c49 = arith.constant 49 : index
    %25 = vector.load %arg2[%c0_25, %c0_26, %c49] : memref<2x3x456xf32, #tpu.memory_space<vmem>>, vector<1x3x384xf32>
    %26 = vector.shape_cast %25 : vector<1x3x384xf32> to vector<3x384xf32>
    %c21 = arith.constant 21 : index
    %c0_27 = arith.constant 0 : index
    %27 = vector.load %arg4[%c21, %c0_27] : memref<32x768xf32, #tpu.memory_space<vmem>>, vector<3x384xf32>
    tpu.vector_store %arg4[%c21, %c0_27], %26 {strides = array<i32>} : memref<32x768xf32, #tpu.memory_space<vmem>>, vector<3x384xf32>,
    %c0_28 = arith.constant 0 : index
    %c0_29 = arith.constant 0 : index
    %c50 = arith.constant 50 : index
    %28 = vector.load %arg2[%c0_28, %c0_29, %c50] : memref<2x3x456xf32, #tpu.memory_space<vmem>>, vector<1x3x384xf32>
    %29 = vector.shape_cast %28 : vector<1x3x384xf32> to vector<3x384xf32>
    %c24_30 = arith.constant 24 : index
    %c0_31 = arith.constant 0 : index
    %30 = vector.load %arg4[%c24_30, %c0_31] : memref<32x768xf32, #tpu.memory_space<vmem>>, vector<3x384xf32>
    tpu.vector_store %arg4[%c24_30, %c0_31], %29 {strides = array<i32>} : memref<32x768xf32, #tpu.memory_space<vmem>>, vector<3x384xf32>,
    %c1_32 = arith.constant 1 : index
    %c0_33 = arith.constant 0 : index
    %c0_34 = arith.constant 0 : index
    %31 = vector.load %arg2[%c1_32, %c0_33, %c0_34] : memref<2x3x456xf32, #tpu.memory_space<vmem>>, vector<1x3x384xf32>
    %32 = vector.shape_cast %31 : vector<1x3x384xf32> to vector<3x384xf32>
    %c0_35 = arith.constant 0 : index
    %c384 = arith.constant 384 : index
    %33 = vector.load %arg4[%c0_35, %c384] : memref<32x768xf32, #tpu.memory_space<vmem>>, vector<3x384xf32>
    tpu.vector_store %arg4[%c0_35, %c384], %32 {strides = array<i32>} : memref<32x768xf32, #tpu.memory_space<vmem>>, vector<3x384xf32>,
    %c1_36 = arith.constant 1 : index
    %c0_37 = arith.constant 0 : index
    %c1_38 = arith.constant 1 : index
    %34 = vector.load %arg2[%c1_36, %c0_37, %c1_38] : memref<2x3x456xf32, #tpu.memory_space<vmem>>, vector<1x3x384xf32>
    %35 = vector.shape_cast %34 : vector<1x3x384xf32> to vector<3x384xf32>
    %c3_39 = arith.constant 3 : index
    %c384_40 = arith.constant 384 : index
    %36 = vector.load %arg4[%c3_39, %c384_40] : memref<32x768xf32, #tpu.memory_space<vmem>>, vector<3x384xf32>
    tpu.vector_store %arg4[%c3_39, %c384_40], %35 {strides = array<i32>} : memref<32x768xf32, #tpu.memory_space<vmem>>, vector<3x384xf32>,
    %c1_41 = arith.constant 1 : index
    %c0_42 = arith.constant 0 : index
    %c2_43 = arith.constant 2 : index
    %37 = vector.load %arg2[%c1_41, %c0_42, %c2_43] : memref<2x3x456xf32, #tpu.memory_space<vmem>>, vector<1x3x384xf32>
    %38 = vector.shape_cast %37 : vector<1x3x384xf32> to vector<3x384xf32>
    %c6_44 = arith.constant 6 : index
    %c384_45 = arith.constant 384 : index
    %39 = vector.load %arg4[%c6_44, %c384_45] : memref<32x768xf32, #tpu.memory_space<vmem>>, vector<3x384xf32>
    tpu.vector_store %arg4[%c6_44, %c384_45], %38 {strides = array<i32>} : memref<32x768xf32, #tpu.memory_space<vmem>>, vector<3x384xf32>,
    %c1_46 = arith.constant 1 : index
    %c0_47 = arith.constant 0 : index
    %c24_48 = arith.constant 24 : index
    %40 = vector.load %arg2[%c1_46, %c0_47, %c24_48] : memref<2x3x456xf32, #tpu.memory_space<vmem>>, vector<1x3x384xf32>
    %41 = vector.shape_cast %40 : vector<1x3x384xf32> to vector<3x384xf32>
    %c9_49 = arith.constant 9 : index
    %c384_50 = arith.constant 384 : index
    %42 = vector.load %arg4[%c9_49, %c384_50] : memref<32x768xf32, #tpu.memory_space<vmem>>, vector<3x384xf32>
    tpu.vector_store %arg4[%c9_49, %c384_50], %41 {strides = array<i32>} : memref<32x768xf32, #tpu.memory_space<vmem>>, vector<3x384xf32>,
    %c1_51 = arith.constant 1 : index
    %c0_52 = arith.constant 0 : index
    %c25_53 = arith.constant 25 : index
    %43 = vector.load %arg2[%c1_51, %c0_52, %c25_53] : memref<2x3x456xf32, #tpu.memory_space<vmem>>, vector<1x3x384xf32>
    %44 = vector.shape_cast %43 : vector<1x3x384xf32> to vector<3x384xf32>
    %c12_54 = arith.constant 12 : index
    %c384_55 = arith.constant 384 : index
    %45 = vector.load %arg4[%c12_54, %c384_55] : memref<32x768xf32, #tpu.memory_space<vmem>>, vector<3x384xf32>
    tpu.vector_store %arg4[%c12_54, %c384_55], %44 {strides = array<i32>} : memref<32x768xf32, #tpu.memory_space<vmem>>, vector<3x384xf32>,
    %c1_56 = arith.constant 1 : index
    %c0_57 = arith.constant 0 : index
    %c26_58 = arith.constant 26 : index
    %46 = vector.load %arg2[%c1_56, %c0_57, %c26_58] : memref<2x3x456xf32, #tpu.memory_space<vmem>>, vector<1x3x384xf32>
    %47 = vector.shape_cast %46 : vector<1x3x384xf32> to vector<3x384xf32>
    %c15_59 = arith.constant 15 : index
    %c384_60 = arith.constant 384 : index
    %48 = vector.load %arg4[%c15_59, %c384_60] : memref<32x768xf32, #tpu.memory_space<vmem>>, vector<3x384xf32>
    tpu.vector_store %arg4[%c15_59, %c384_60], %47 {strides = array<i32>} : memref<32x768xf32, #tpu.memory_space<vmem>>, vector<3x384xf32>,
    %c1_61 = arith.constant 1 : index
    %c0_62 = arith.constant 0 : index
    %c48_63 = arith.constant 48 : index
    %49 = vector.load %arg2[%c1_61, %c0_62, %c48_63] : memref<2x3x456xf32, #tpu.memory_space<vmem>>, vector<1x3x384xf32>
    %50 = vector.shape_cast %49 : vector<1x3x384xf32> to vector<3x384xf32>
    %c18_64 = arith.constant 18 : index
    %c384_65 = arith.constant 384 : index
    %51 = vector.load %arg4[%c18_64, %c384_65] : memref<32x768xf32, #tpu.memory_space<vmem>>, vector<3x384xf32>
    tpu.vector_store %arg4[%c18_64, %c384_65], %50 {strides = array<i32>} : memref<32x768xf32, #tpu.memory_space<vmem>>, vector<3x384xf32>,
    %c1_66 = arith.constant 1 : index
    %c0_67 = arith.constant 0 : index
    %c49_68 = arith.constant 49 : index
    %52 = vector.load %arg2[%c1_66, %c0_67, %c49_68] : memref<2x3x456xf32, #tpu.memory_space<vmem>>, vector<1x3x384xf32>
    %53 = vector.shape_cast %52 : vector<1x3x384xf32> to vector<3x384xf32>
    %c21_69 = arith.constant 21 : index
    %c384_70 = arith.constant 384 : index
    %54 = vector.load %arg4[%c21_69, %c384_70] : memref<32x768xf32, #tpu.memory_space<vmem>>, vector<3x384xf32>
    tpu.vector_store %arg4[%c21_69, %c384_70], %53 {strides = array<i32>} : memref<32x768xf32, #tpu.memory_space<vmem>>, vector<3x384xf32>,
    %c1_71 = arith.constant 1 : index
    %c0_72 = arith.constant 0 : index
    %c50_73 = arith.constant 50 : index
    %55 = vector.load %arg2[%c1_71, %c0_72, %c50_73] : memref<2x3x456xf32, #tpu.memory_space<vmem>>, vector<1x3x384xf32>
    %56 = vector.shape_cast %55 : vector<1x3x384xf32> to vector<3x384xf32>
    %c24_74 = arith.constant 24 : index
    %c384_75 = arith.constant 384 : index
    %57 = vector.load %arg4[%c24_74, %c384_75] : memref<32x768xf32, #tpu.memory_space<vmem>>, vector<3x384xf32>
    tpu.vector_store %arg4[%c24_74, %c384_75], %56 {strides = array<i32>} : memref<32x768xf32, #tpu.memory_space<vmem>>, vector<3x384xf32>,
    %c0_76 = arith.constant 0 : index
    %c0_77 = arith.constant 0 : index
    %58 = vector.load %arg1[%c0_76, %c0_77] : memref<8x32xf32, #tpu.memory_space<vmem>>, vector<8x32xf32>
    %c0_78 = arith.constant 0 : index
    %c0_79 = arith.constant 0 : index
    %59 = vector.load %arg4[%c0_78, %c0_79] : memref<32x768xf32, #tpu.memory_space<vmem>>, vector<32x768xf32>
    %cst_80 = arith.constant dense<0.000000e+00> : vector<8x768xf32>
    %60 = tpu.matmul %58, %59, %cst_80 {dimension_numbers = #tpu.dot_dimension_numbers<[1], [0], [0], [1], [0, 0, 1, 1], [], []>} : vector<8x32xf32>, vector<32x768xf32>, vector<8x768xf32> -> vector<8x768xf32>
    %cst_81 = arith.constant 0.000000e+00 : f32
    %61 = vector.broadcast %cst_81 : f32 to vector<8x768xf32>
    %62 = arith.maximumf %60, %61 : vector<8x768xf32>
    %c0_82 = arith.constant 0 : index
    %c0_83 = arith.constant 0 : index
    %c0_84 = arith.constant 0 : index
    %63 = vector.load %arg3[%c0_82, %c0_83, %c0_84] : memref<1x8x768xf32, #tpu.memory_space<vmem>>, vector<1x8x768xf32>
    %64 = vector.shape_cast %63 : vector<1x8x768xf32> to vector<8x768xf32>
    %65 = vector.shape_cast %62 : vector<8x768xf32> to vector<1x8x768xf32>
    tpu.vector_store %arg3[%c0_82, %c0_83, %c0_84], %65 {strides = array<i32>} : memref<1x8x768xf32, #tpu.memory_space<vmem>>, vector<1x8x768xf32>,
    return
  }
  func.func @transform_0(%arg0: i32) -> (i32, i32) {
    %c0_i32 = arith.constant 0 : i32
    %c0_i32_0 = arith.constant 0 : i32
    %c0_i32_1 = arith.constant 0 : i32
    return %c0_i32, %c0_i32_0 : i32, i32
  }
  func.func @transform_1(%arg0: i32) -> (i32, i32, i32) {
    %c0_i32 = arith.constant 0 : i32
    %c0_i32_0 = arith.constant 0 : i32
    %c0_i32_1 = arith.constant 0 : i32
    return %arg0, %c0_i32, %c0_i32_0 : i32, i32, i32
  }
  func.func @transform_2(%arg0: i32) -> (i32, i32, i32) {
    %c0_i32 = arith.constant 0 : i32
    %c0_i32_0 = arith.constant 0 : i32
    %c0_i32_1 = arith.constant 0 : i32
    return %arg0, %c0_i32, %c0_i32_0 : i32, i32, i32
  }
}

</mosaic_0001>

<llo_original>
// kernel: tpu_custom_call.1
$region0: #{tpu_custom_call.1}
  #allocation0 [shape = 'u32[]', space=smem, size = 0x4, offset = 0x4, fixed_abs, tag = 'smem constant byte address 0x4 - core index']
  #allocation1 [shape = 'u32[144,128]{1,0:T(1,128)}', space=vmem, size = 0x12000, scoped, tag = 'internal scratch']
  #allocation2 [shape = 'f32[32,768]{1,0:T(8,128)}', space=vmem, size = 0x18000, scoped, tag = 'scratch operand']
  %s0 = inlined_call_operand.vmem [shape: f32[8,32], index: 0, kind: input, shape index: {}]
  %s1 = inlined_call_operand.vmem [shape: f32[2,3,456], index: 1, kind: input, shape index: {}]
  %s2 = inlined_call_operand.hbm [shape: f32[1,8,768], index: 2, kind: output, shape index: {}]
  %s3 = sld [smem:[#allocation0]]
  $region18: #{tpu_custom_call.1} parent=0
    _
  %s5 = ssub.s32 1, %s3
  %s6 = scalar_select 0, %s5, %s3
  $region1: #{tpu_custom_call.1} parent=0
    #allocation3 [shape = 'u8[24576]{0}', space=vmem, size = 0x6000, scoped, tag = 'output window, operand 0, single buffered']
    #allocation4 [shape = 's32[1]{0}', space=sflag, size = 0x4, scoped, tag = 'scoped memory for tpu_custom_call.1']
    %7 = vsyncpa [#allocation4], 0
    // Predicated region
    $region2: #{tpu_custom_call.1} parent=1 // pred_check
      _
    $region3: #{tpu_custom_call.1} parent=1 // pred_check_branch
      %9 = sbr.rel (0) target = $region5
    $region4: #{tpu_custom_call.1} parent=1 // pred_region
      _
    $region5: #{tpu_custom_call.1} parent=1 // pred_fallthru
      _
    // Predicated region
    $region6: #{tpu_custom_call.1} parent=1 // pred_check
      _
    $region7: #{tpu_custom_call.1} parent=1 // pred_check_branch
      %11 = sbr.rel (0) target = $region9
    $region8: #{tpu_custom_call.1} parent=1 // pred_region
      _
    $region9: #{tpu_custom_call.1} parent=1 // pred_fallthru
      _
    %v12 = vlaneseq
    %vm13 = vcmp.ge.s32.totalorder %v12, 0
    %vm14 = vcmp.lt.s32.totalorder %v12, 768
    %vm15 = vmand %vm13, %vm14
    %s16 = scalar_lea.vmem [#allocation2], 147
    %17 = vst.msk [vmem:[%s16] ss:$8 sm:$0xf] %vm15, 1.0
    %18 = vst.msk [vmem:[%s16] ss:$8 sm:$0x30] %vm15, 1.0
    %19 = vst [vmem:[#allocation2 + $0x90] sm:$0xf0] 0.0
    %20 = vst [vmem:[#allocation2 + $0x98] sm:$0xf0] 0.0
    %21 = vst [vmem:[#allocation2 + $0xa0] sm:$0xf0] 0.0
    %22 = vst [vmem:[#allocation2 + $0xa8] sm:$0xf0] 0.0
    %23 = vst [vmem:[#allocation2 + $0xb0] sm:$0xf0] 0.0
    %24 = vst [vmem:[#allocation2 + $0xb8] sm:$0xf0] 0.0
    %v25 = vld [vmem:[%s1] sm:$0x77]
    %v26 = vld [vmem:[%s1 + $0x8] sm:$0x7]
    %v28 = vcombine.high %v25, %v25
    %30 = vst [vmem:[#allocation2] sm:$0x7] %v25
    %31 = vst [vmem:[#allocation2 + $0x8] sm:$0x7] %v28
    %32 = vst [vmem:[#allocation2 + $0x10] sm:$0x7] %v26
    %v33 = vld [vmem:[%s1] sm:$0x77]
    %v34 = vld [vmem:[%s1 + $0x8] sm:$0x77]
    %v37 = vcombine.high %v33, %v33
    %v38 = vcombine.high %v34, %v34
    %v39 = vrot.slane %v33, 5
    %v40 = vrot.slane %v37, 5
    %v41 = vrot.slane %v34, 5
    %v42 = vrot.slane %v38, 5
    %43 = vrot.lane.b32.xlu0 %v39, 127
    %v44 = vpop.permute.xlu0 %43
    %45 = vrot.lane.b32.xlu0 %v40, 127
    %v46 = vpop.permute.xlu0 %45
    %47 = vrot.lane.b32.xlu0 %v41, 127
    %v48 = vpop.permute.xlu0 %47
    %49 = vrot.lane.b32.xlu0 %v42, 127
    %v50 = vpop.permute.xlu0 %49
    %vm51 = vcmask 1039360
    %v52 = vsel %vm51, %v44, %v46
    %v53 = vsel %vm51, %v46, %v48
    %v54 = vsel %vm51, %v48, %v50
    %58 = vst [vmem:[#allocation2] sm:$0x38] %v52
    %59 = vst [vmem:[#allocation2 + $0x8] sm:$0x38] %v53
    %60 = vst [vmem:[#allocation2 + $0x10] sm:$0x38] %v54
    %v61 = vld [vmem:[%s1] sm:$0x77]
    %v62 = vld [vmem:[%s1 + $0x8] sm:$0x77]
    %v65 = vcombine.high %v61, %v61
    %v66 = vcombine.high %v62, %v62
    %v67 = vrot.slane %v61, 2
    %v68 = vrot.slane %v65, 2
    %v69 = vrot.slane %v62, 2
    %v70 = vrot.slane %v66, 2
    %71 = vrot.lane.b32.xlu0 %v67, 126
    %v72 = vpop.permute.xlu0 %71
    %73 = vrot.lane.b32.xlu0 %v68, 126
    %v74 = vpop.permute.xlu0 %73
    %75 = vrot.lane.b32.xlu0 %v69, 126
    %v76 = vpop.permute.xlu0 %75
    %77 = vrot.lane.b32.xlu0 %v70, 126
    %v78 = vpop.permute.xlu0 %77
    %vm79 = vcmask 1031168
    %v80 = vsel %vm79, %v72, %v74
    %v81 = vsel %vm79, %v74, %v76
    %v82 = vsel %vm79, %v76, %v78
    %86 = vst [vmem:[#allocation2] sm:$0xc0] %v80
    %87 = vst [vmem:[#allocation2 + $0x8] sm:$0xc0] %v81
    %88 = vst [vmem:[#allocation2 + $0x10] sm:$0xc0] %v82
    %89 = vst [vmem:[#allocation2 + $0x30] sm:$0x1] %v80
    %90 = vst [vmem:[#allocation2 + $0x38] sm:$0x1] %v81
    %91 = vst [vmem:[#allocation2 + $0x40] sm:$0x1] %v82
    %v92 = vld [vmem:[%s1] sm:$0x77]
    %v93 = vld [vmem:[%s1 + $0x8] sm:$0x77]
    %v96 = vcombine.high %v92, %v92
    %v97 = vcombine.high %v93, %v93
    %v98 = vrot.slane %v92, 7
    %v99 = vrot.slane %v96, 7
    %v100 = vrot.slane %v93, 7
    %v101 = vrot.slane %v97, 7
    %102 = vrot.lane.b32.xlu0 %v98, 104
    %v103 = vpop.permute.xlu0 %102
    %104 = vrot.lane.b32.xlu0 %v99, 104
    %v105 = vpop.permute.xlu0 %104
    %106 = vrot.lane.b32.xlu0 %v100, 104
    %v107 = vpop.permute.xlu0 %106
    %108 = vrot.lane.b32.xlu0 %v101, 104
    %v109 = vpop.permute.xlu0 %108
    %vm110 = vcmask 850944
    %v111 = vsel %vm110, %v103, %v105
    %v112 = vsel %vm110, %v105, %v107
    %v113 = vsel %vm110, %v107, %v109
    %117 = vst [vmem:[#allocation2 + $0x30] sm:$0xe] %v111
    %118 = vst [vmem:[#allocation2 + $0x38] sm:$0xe] %v112
    %119 = vst [vmem:[#allocation2 + $0x40] sm:$0xe] %v113
    %v120 = vld [vmem:[%s1] sm:$0x77]
    %v121 = vld [vmem:[%s1 + $0x8] sm:$0x77]
    %v124 = vcombine.low %v120, %v120
    %v125 = vcombine.low %v121, %v121
    %126 = vrot.lane.b32.xlu0 %v124, 103
    %v127 = vpop.permute.xlu0 %126
    %128 = vrot.lane.b32.xlu0 %v120, 103
    %v129 = vpop.permute.xlu0 %128
    %130 = vrot.lane.b32.xlu0 %v125, 103
    %v131 = vpop.permute.xlu0 %130
    %132 = vrot.lane.b32.xlu0 %v121, 103
    %v133 = vpop.permute.xlu0 %132
    %vm134 = vcmask 842752
    %v135 = vsel %vm134, %v127, %v129
    %v136 = vsel %vm134, %v129, %v131
    %v137 = vsel %vm134, %v131, %v133
    %141 = vst [vmem:[#allocation2 + $0x30] sm:$0x70] %v135
    %142 = vst [vmem:[#allocation2 + $0x38] sm:$0x70] %v136
    %143 = vst [vmem:[#allocation2 + $0x40] sm:$0x70] %v137
    %v144 = vld [vmem:[%s1] sm:$0x77]
    %v145 = vld [vmem:[%s1 + $0x8] sm:$0x77]
    %v148 = vcombine.high %v144, %v144
    %v149 = vcombine.high %v145, %v145
    %v150 = vrot.slane %v144, 1
    %v151 = vrot.slane %v148, 1
    %v152 = vrot.slane %v145, 1
    %v153 = vrot.slane %v149, 1
    %154 = vrot.lane.b32.xlu0 %v150, 102
    %v155 = vpop.permute.xlu0 %154
    %156 = vrot.lane.b32.xlu0 %v151, 102
    %v157 = vpop.permute.xlu0 %156
    %158 = vrot.lane.b32.xlu0 %v152, 102
    %v159 = vpop.permute.xlu0 %158
    %160 = vrot.lane.b32.xlu0 %v153, 102
    %v161 = vpop.permute.xlu0 %160
    %vm162 = vcmask 834560
    %v163 = vsel %vm162, %v155, %v157
    %v164 = vsel %vm162, %v157, %v159
    %v165 = vsel %vm162, %v159, %v161
    %169 = vst [vmem:[#allocation2 + $0x30] sm:$0x80] %v163
    %170 = vst [vmem:[#allocation2 + $0x38] sm:$0x80] %v164
    %171 = vst [vmem:[#allocation2 + $0x40] sm:$0x80] %v165
    %172 = vst [vmem:[#allocation2 + $0x60] sm:$0x3] %v163
    %173 = vst [vmem:[#allocation2 + $0x68] sm:$0x3] %v164
    %174 = vst [vmem:[#allocation2 + $0x70] sm:$0x3] %v165
    %v175 = vld [vmem:[%s1] sm:$0x77]
    %v176 = vld [vmem:[%s1 + $0x8] sm:$0x77]
    %v179 = vcombine.high %v175, %v175
    %v180 = vcombine.high %v176, %v176
    %v181 = vrot.slane %v175, 6
    %v182 = vrot.slane %v179, 6
    %v183 = vrot.slane %v176, 6
    %v184 = vrot.slane %v180, 6
    %185 = vrot.lane.b32.xlu0 %v181, 80
    %v186 = vpop.permute.xlu0 %185
    %187 = vrot.lane.b32.xlu0 %v182, 80
    %v188 = vpop.permute.xlu0 %187
    %189 = vrot.lane.b32.xlu0 %v183, 80
    %v190 = vpop.permute.xlu0 %189
    %191 = vrot.lane.b32.xlu0 %v184, 80
    %v192 = vpop.permute.xlu0 %191
    %vm193 = vcmask 654336
    %v194 = vsel %vm193, %v186, %v188
    %v195 = vsel %vm193, %v188, %v190
    %v196 = vsel %vm193, %v190, %v192
    %200 = vst [vmem:[#allocation2 + $0x60] sm:$0x1c] %v194
    %201 = vst [vmem:[#allocation2 + $0x68] sm:$0x1c] %v195
    %202 = vst [vmem:[#allocation2 + $0x70] sm:$0x1c] %v196
    %v203 = vld [vmem:[%s1] sm:$0x77]
    %v204 = vld [vmem:[%s1 + $0x8] sm:$0x77]
    %v207 = vcombine.high %v203, %v203
    %v208 = vcombine.high %v204, %v204
    %v209 = vrot.slane %v203, 3
    %v210 = vrot.slane %v207, 3
    %v211 = vrot.slane %v204, 3
    %v212 = vrot.slane %v208, 3
    %213 = vrot.lane.b32.xlu0 %v209, 79
    %v214 = vpop.permute.xlu0 %213
    %215 = vrot.lane.b32.xlu0 %v210, 79
    %v216 = vpop.permute.xlu0 %215
    %217 = vrot.lane.b32.xlu0 %v211, 79
    %v218 = vpop.permute.xlu0 %217
    %219 = vrot.lane.b32.xlu0 %v212, 79
    %v220 = vpop.permute.xlu0 %219
    %vm221 = vcmask 646144
    %v222 = vsel %vm221, %v214, %v216
    %v223 = vsel %vm221, %v216, %v218
    %v224 = vsel %vm221, %v218, %v220
    %228 = vst [vmem:[#allocation2 + $0x60] sm:$0xe0] %v222
    %229 = vst [vmem:[#allocation2 + $0x68] sm:$0xe0] %v223
    %230 = vst [vmem:[#allocation2 + $0x70] sm:$0xe0] %v224
    %v231 = vld [vmem:[%s1] sm:$0x77]
    %v232 = vld [vmem:[%s1 + $0x8] sm:$0x77]
    %v235 = vcombine.high %v231, %v231
    %v236 = vcombine.high %v232, %v232
    %237 = vrot.lane.b32.xlu0 %v231, 78
    %v238 = vpop.permute.xlu0 %237
    %239 = vrot.lane.b32.xlu0 %v235, 78
    %v240 = vpop.permute.xlu0 %239
    %241 = vrot.lane.b32.xlu0 %v232, 78
    %v242 = vpop.permute.xlu0 %241
    %243 = vrot.lane.b32.xlu0 %v236, 78
    %v244 = vpop.permute.xlu0 %243
    %vm245 = vcmask 637952
    %v246 = vsel %vm245, %v238, %v240
    %v247 = vsel %vm245, %v240, %v242
    %v248 = vsel %vm245, %v242, %v244
    %252 = vst [vmem:[#allocation2 + $0x90] sm:$0x7] %v246
    %253 = vst [vmem:[#allocation2 + $0x98] sm:$0x7] %v247
    %254 = vst [vmem:[#allocation2 + $0xa0] sm:$0x7] %v248
    %s255 = scalar_lea.vmem %s1, 16
    %v256 = vld [vmem:[%s255] sm:$0x77]
    %v257 = vld [vmem:[%s255 + $0x8] sm:$0x7]
    %v259 = vcombine.high %v256, %v256
    %261 = vst [vmem:[#allocation2 + $0x18] sm:$0x7] %v256
    %262 = vst [vmem:[#allocation2 + $0x20] sm:$0x7] %v259
    %263 = vst [vmem:[#allocation2 + $0x28] sm:$0x7] %v257
    %v264 = vld [vmem:[%s255] sm:$0x77]
    %v265 = vld [vmem:[%s255 + $0x8] sm:$0x77]
    %v268 = vcombine.high %v264, %v264
    %v269 = vcombine.high %v265, %v265
    %v270 = vrot.slane %v264, 5
    %v271 = vrot.slane %v268, 5
    %v272 = vrot.slane %v265, 5
    %v273 = vrot.slane %v269, 5
    %274 = vrot.lane.b32.xlu0 %v270, 127
    %v275 = vpop.permute.xlu0 %274
    %276 = vrot.lane.b32.xlu0 %v271, 127
    %v277 = vpop.permute.xlu0 %276
    %278 = vrot.lane.b32.xlu0 %v272, 127
    %v279 = vpop.permute.xlu0 %278
    %280 = vrot.lane.b32.xlu0 %v273, 127
    %v281 = vpop.permute.xlu0 %280
    %v282 = vsel %vm51, %v275, %v277
    %v283 = vsel %vm51, %v277, %v279
    %v284 = vsel %vm51, %v279, %v281
    %288 = vst [vmem:[#allocation2 + $0x18] sm:$0x38] %v282
    %289 = vst [vmem:[#allocation2 + $0x20] sm:$0x38] %v283
    %290 = vst [vmem:[#allocation2 + $0x28] sm:$0x38] %v284
    %v291 = vld [vmem:[%s255] sm:$0x77]
    %v292 = vld [vmem:[%s255 + $0x8] sm:$0x77]
    %v295 = vcombine.high %v291, %v291
    %v296 = vcombine.high %v292, %v292
    %v297 = vrot.slane %v291, 2
    %v298 = vrot.slane %v295, 2
    %v299 = vrot.slane %v292, 2
    %v300 = vrot.slane %v296, 2
    %301 = vrot.lane.b32.xlu0 %v297, 126
    %v302 = vpop.permute.xlu0 %301
    %303 = vrot.lane.b32.xlu0 %v298, 126
    %v304 = vpop.permute.xlu0 %303
    %305 = vrot.lane.b32.xlu0 %v299, 126
    %v306 = vpop.permute.xlu0 %305
    %307 = vrot.lane.b32.xlu0 %v300, 126
    %v308 = vpop.permute.xlu0 %307
    %v309 = vsel %vm79, %v302, %v304
    %v310 = vsel %vm79, %v304, %v306
    %v311 = vsel %vm79, %v306, %v308
    %315 = vst [vmem:[#allocation2 + $0x18] sm:$0xc0] %v309
    %316 = vst [vmem:[#allocation2 + $0x20] sm:$0xc0] %v310
    %317 = vst [vmem:[#allocation2 + $0x28] sm:$0xc0] %v311
    %318 = vst [vmem:[#allocation2 + $0x48] sm:$0x1] %v309
    %319 = vst [vmem:[#allocation2 + $0x50] sm:$0x1] %v310
    %320 = vst [vmem:[#allocation2 + $0x58] sm:$0x1] %v311
    %v321 = vld [vmem:[%s255] sm:$0x77]
    %v322 = vld [vmem:[%s255 + $0x8] sm:$0x77]
    %v325 = vcombine.high %v321, %v321
    %v326 = vcombine.high %v322, %v322
    %v327 = vrot.slane %v321, 7
    %v328 = vrot.slane %v325, 7
    %v329 = vrot.slane %v322, 7
    %v330 = vrot.slane %v326, 7
    %331 = vrot.lane.b32.xlu0 %v327, 104
    %v332 = vpop.permute.xlu0 %331
    %333 = vrot.lane.b32.xlu0 %v328, 104
    %v334 = vpop.permute.xlu0 %333
    %335 = vrot.lane.b32.xlu0 %v329, 104
    %v336 = vpop.permute.xlu0 %335
    %337 = vrot.lane.b32.xlu0 %v330, 104
    %v338 = vpop.permute.xlu0 %337
    %v339 = vsel %vm110, %v332, %v334
    %v340 = vsel %vm110, %v334, %v336
    %v341 = vsel %vm110, %v336, %v338
    %345 = vst [vmem:[#allocation2 + $0x48] sm:$0xe] %v339
    %346 = vst [vmem:[#allocation2 + $0x50] sm:$0xe] %v340
    %347 = vst [vmem:[#allocation2 + $0x58] sm:$0xe] %v341
    %v348 = vld [vmem:[%s255] sm:$0x77]
    %v349 = vld [vmem:[%s255 + $0x8] sm:$0x77]
    %v352 = vcombine.low %v348, %v348
    %v353 = vcombine.low %v349, %v349
    %354 = vrot.lane.b32.xlu0 %v352, 103
    %v355 = vpop.permute.xlu0 %354
    %356 = vrot.lane.b32.xlu0 %v348, 103
    %v357 = vpop.permute.xlu0 %356
    %358 = vrot.lane.b32.xlu0 %v353, 103
    %v359 = vpop.permute.xlu0 %358
    %360 = vrot.lane.b32.xlu0 %v349, 103
    %v361 = vpop.permute.xlu0 %360
    %v362 = vsel %vm134, %v355, %v357
    %v363 = vsel %vm134, %v357, %v359
    %v364 = vsel %vm134, %v359, %v361
    %368 = vst [vmem:[#allocation2 + $0x48] sm:$0x70] %v362
    %369 = vst [vmem:[#allocation2 + $0x50] sm:$0x70] %v363
    %370 = vst [vmem:[#allocation2 + $0x58] sm:$0x70] %v364
    %v371 = vld [vmem:[%s255] sm:$0x77]
    %v372 = vld [vmem:[%s255 + $0x8] sm:$0x77]
    %v375 = vcombine.high %v371, %v371
    %v376 = vcombine.high %v372, %v372
    %v377 = vrot.slane %v371, 1
    %v378 = vrot.slane %v375, 1
    %v379 = vrot.slane %v372, 1
    %v380 = vrot.slane %v376, 1
    %381 = vrot.lane.b32.xlu0 %v377, 102
    %v382 = vpop.permute.xlu0 %381
    %383 = vrot.lane.b32.xlu0 %v378, 102
    %v384 = vpop.permute.xlu0 %383
    %385 = vrot.lane.b32.xlu0 %v379, 102
    %v386 = vpop.permute.xlu0 %385
    %387 = vrot.lane.b32.xlu0 %v380, 102
    %v388 = vpop.permute.xlu0 %387
    %v389 = vsel %vm162, %v382, %v384
    %v390 = vsel %vm162, %v384, %v386
    %v391 = vsel %vm162, %v386, %v388
    %395 = vst [vmem:[#allocation2 + $0x48] sm:$0x80] %v389
    %396 = vst [vmem:[#allocation2 + $0x50] sm:$0x80] %v390
    %397 = vst [vmem:[#allocation2 + $0x58] sm:$0x80] %v391
    %398 = vst [vmem:[#allocation2 + $0x78] sm:$0x3] %v389
    %399 = vst [vmem:[#allocation2 + $0x80] sm:$0x3] %v390
    %400 = vst [vmem:[#allocation2 + $0x88] sm:$0x3] %v391
    %v401 = vld [vmem:[%s255] sm:$0x77]
    %v402 = vld [vmem:[%s255 + $0x8] sm:$0x77]
    %v405 = vcombine.high %v401, %v401
    %v406 = vcombine.high %v402, %v402
    %v407 = vrot.slane %v401, 6
    %v408 = vrot.slane %v405, 6
    %v409 = vrot.slane %v402, 6
    %v410 = vrot.slane %v406, 6
    %411 = vrot.lane.b32.xlu0 %v407, 80
    %v412 = vpop.permute.xlu0 %411
    %413 = vrot.lane.b32.xlu0 %v408, 80
    %v414 = vpop.permute.xlu0 %413
    %415 = vrot.lane.b32.xlu0 %v409, 80
    %v416 = vpop.permute.xlu0 %415
    %417 = vrot.lane.b32.xlu0 %v410, 80
    %v418 = vpop.permute.xlu0 %417
    %v419 = vsel %vm193, %v412, %v414
    %v420 = vsel %vm193, %v414, %v416
    %v421 = vsel %vm193, %v416, %v418
    %425 = vst [vmem:[#allocation2 + $0x78] sm:$0x1c] %v419
    %426 = vst [vmem:[#allocation2 + $0x80] sm:$0x1c] %v420
    %427 = vst [vmem:[#allocation2 + $0x88] sm:$0x1c] %v421
    %v428 = vld [vmem:[%s255] sm:$0x77]
    %v429 = vld [vmem:[%s255 + $0x8] sm:$0x77]
    %v432 = vcombine.high %v428, %v428
    %v433 = vcombine.high %v429, %v429
    %v434 = vrot.slane %v428, 3
    %v435 = vrot.slane %v432, 3
    %v436 = vrot.slane %v429, 3
    %v437 = vrot.slane %v433, 3
    %438 = vrot.lane.b32.xlu0 %v434, 79
    %v439 = vpop.permute.xlu0 %438
    %440 = vrot.lane.b32.xlu0 %v435, 79
    %v441 = vpop.permute.xlu0 %440
    %442 = vrot.lane.b32.xlu0 %v436, 79
    %v443 = vpop.permute.xlu0 %442
    %444 = vrot.lane.b32.xlu0 %v437, 79
    %v445 = vpop.permute.xlu0 %444
    %v446 = vsel %vm221, %v439, %v441
    %v447 = vsel %vm221, %v441, %v443
    %v448 = vsel %vm221, %v443, %v445
    %452 = vst [vmem:[#allocation2 + $0x78] sm:$0xe0] %v446
    %453 = vst [vmem:[#allocation2 + $0x80] sm:$0xe0] %v447
    %454 = vst [vmem:[#allocation2 + $0x88] sm:$0xe0] %v448
    %v455 = vld [vmem:[%s255] sm:$0x77]
    %v456 = vld [vmem:[%s255 + $0x8] sm:$0x77]
    %v459 = vcombine.high %v455, %v455
    %v460 = vcombine.high %v456, %v456
    %461 = vrot.lane.b32.xlu0 %v455, 78
    %v462 = vpop.permute.xlu0 %461
    %463 = vrot.lane.b32.xlu0 %v459, 78
    %v464 = vpop.permute.xlu0 %463
    %465 = vrot.lane.b32.xlu0 %v456, 78
    %v466 = vpop.permute.xlu0 %465
    %467 = vrot.lane.b32.xlu0 %v460, 78
    %v468 = vpop.permute.xlu0 %467
    %v469 = vsel %vm245, %v462, %v464
    %v470 = vsel %vm245, %v464, %v466
    %v471 = vsel %vm245, %v466, %v468
    %475 = vst [vmem:[#allocation2 + $0xa8] sm:$0x7] %v469
    %476 = vst [vmem:[#allocation2 + $0xb0] sm:$0x7] %v470
    %477 = vst [vmem:[#allocation2 + $0xb8] sm:$0x7] %v471
    %v478 = vld [vmem:[%s0] sm:$0xff]
    %v479 = vld [vmem:[#allocation2] sm:$0xff]
    %v480 = vld [vmem:[#allocation2 + $0x8] sm:$0xff]
    %v481 = vld [vmem:[#allocation2 + $0x10] sm:$0xff]
    %v482 = vld [vmem:[#allocation2 + $0x18] sm:$0xff]
    %v483 = vld [vmem:[#allocation2 + $0x20] sm:$0xff]
    %v484 = vld [vmem:[#allocation2 + $0x28] sm:$0xff]
    %v485 = vld [vmem:[#allocation2 + $0x30] sm:$0xff]
    %v486 = vld [vmem:[#allocation2 + $0x38] sm:$0xff]
    %v487 = vld [vmem:[#allocation2 + $0x40] sm:$0xff]
    %v488 = vld [vmem:[#allocation2 + $0x48] sm:$0xff]
    %v489 = vld [vmem:[#allocation2 + $0x50] sm:$0xff]
    %v490 = vld [vmem:[#allocation2 + $0x58] sm:$0xff]
    %v491 = vld [vmem:[#allocation2 + $0x60] sm:$0xff]
    %v492 = vld [vmem:[#allocation2 + $0x68] sm:$0xff]
    %v493 = vld [vmem:[#allocation2 + $0x70] sm:$0xff]
    %v494 = vld [vmem:[#allocation2 + $0x78] sm:$0xff]
    %v495 = vld [vmem:[#allocation2 + $0x80] sm:$0xff]
    %v496 = vld [vmem:[#allocation2 + $0x88] sm:$0xff]
    %v497 = vld [vmem:[#allocation2 + $0x90] sm:$0xff]
    %v498 = vld [vmem:[#allocation2 + $0x98] sm:$0xff]
    %v499 = vld [vmem:[#allocation2 + $0xa0] sm:$0xff]
    %v500 = vld [vmem:[#allocation2 + $0xa8] sm:$0xff]
    %v501 = vld [vmem:[#allocation2 + $0xb0] sm:$0xff]
    %v502 = vld [vmem:[#allocation2 + $0xb8] sm:$0xff]
    %vm503 = vcmask 261120
    %v505 = vsel %vm503, %v478, 0
    %507 = vmatprep.subr.mxu0 %v480
    %508 = vmatpush1.msra.mxu0 %v479
    %509 = vmatprep.subr.mxu0 %v486
    %510 = vmatpush1.msra.mxu0 %v485
    %511 = vmatprep.subr.mxu0 %v492
    %512 = vmatpush1.msra.mxu0 %v491
    %513 = vmatprep.subr.mxu0 %v498
    %514 = vmatpush1.msra.mxu0 %v497
    %515 = vmatprep.subr.mxu0 0.0
    %516 = vmatpush1.msra.mxu0 0.0
    %517 = vmatprep.subr.mxu0 0.0
    %518 = vmatpush1.msra.mxu0 0.0
    %519 = vmatprep.subr.mxu0 0.0
    %520 = vmatpush1.msra.mxu0 0.0
    %521 = vmatprep.subr.mxu0 0.0
    %522 = vmatpush1.msra.mxu0 0.0
    %523 = vmatprep.subr.mxu0 0.0
    %524 = vmatpush1.msra.mxu0 0.0
    %525 = vmatprep.subr.mxu0 0.0
    %526 = vmatpush1.msra.mxu0 0.0
    %527 = vmatprep.subr.mxu0 0.0
    %528 = vmatpush1.msra.mxu0 0.0
    %529 = vmatprep.subr.mxu0 0.0
    %530 = vmatpush1.msra.mxu0 0.0
    %531 = vmatprep.subr.mxu0 0.0
    %532 = vmatpush1.msra.mxu0 0.0
    %533 = vmatprep.subr.mxu0 0.0
    %534 = vmatpush1.msra.mxu0 0.0
    %535 = vmatprep.subr.mxu0 0.0
    %536 = vmatpush1.msra.mxu0 0.0
    %537 = vmatprep.subr.mxu0 0.0
    %538 = vmatpush1.msra.mxu0 0.0
    %539 = vmatprep.subr.mxu0 0.0
    %540 = vmatpush1.msra.mxu0 0.0
    %541 = vmatprep.subr.mxu0 0.0
    %542 = vmatpush1.msra.mxu0 0.0
    %543 = vmatprep.subr.mxu0 0.0
    %544 = vmatpush1.msra.mxu0 0.0
    %545 = vmatprep.subr.mxu0 0.0
    %546 = vmatpush1.msra.mxu0 0.0
    %547 = vmatprep.subr.mxu0 0.0
    %548 = vmatpush1.msra.mxu0 0.0
    %549 = vmatprep.subr.mxu0 0.0
    %550 = vmatpush1.msra.mxu0 0.0
    %551 = vmatprep.subr.mxu0 0.0
    %552 = vmatpush1.msra.mxu0 0.0
    %553 = vmatprep.subr.mxu0 0.0
    %554 = vmatpush1.msra.mxu0 0.0
    %555 = vmatprep.subr.mxu0 0.0
    %556 = vmatpush1.msra.mxu0 0.0
    %557 = vmatprep.subr.mxu0 0.0
    %558 = vmatpush1.msra.mxu0 0.0
    %559 = vmatprep.subr.mxu0 0.0
    %560 = vmatpush1.msra.mxu0 0.0
    %561 = vmatprep.subr.mxu0 0.0
    %562 = vmatpush1.msra.mxu0 0.0
    %563 = vmatprep.subr.mxu0 0.0
    %564 = vmatpush1.msra.mxu0 0.0
    %565 = vmatprep.subr.mxu0 0.0
    %566 = vmatpush1.msra.mxu0 0.0
    %567 = vmatprep.subr.mxu0 0.0
    %568 = vmatpush1.msra.mxu0 0.0
    %569 = vmatprep.subr.mxu0 0.0
    %570 = vmatpush1.msra.mxu0 0.0
    %571 = vmatprep.mubr.f32.mxu0 0.0
    %572 = vmatmul.mubr.f32.gmra.mrb[0].mxu0 %v505
    %v573 = vpop.f32.mrb[0].mxu0
    %v574 = vadd.f32 0.0, %v573
    %v575 = vpop.f32.mrb[0].mxu0
    %v576 = vadd.f32 0.0, %v575
    %577 = vdwg.mxu0
    %578 = vmatprep.subr.mxu0 %v482
    %579 = vmatpush1.msra.mxu0 %v481
    %580 = vmatprep.subr.mxu0 %v488
    %581 = vmatpush1.msra.mxu0 %v487
    %582 = vmatprep.subr.mxu0 %v494
    %583 = vmatpush1.msra.mxu0 %v493
    %584 = vmatprep.subr.mxu0 %v500
    %585 = vmatpush1.msra.mxu0 %v499
    %586 = vmatprep.subr.mxu0 0.0
    %587 = vmatpush1.msra.mxu0 0.0
    %588 = vmatprep.subr.mxu0 0.0
    %589 = vmatpush1.msra.mxu0 0.0
    %590 = vmatprep.subr.mxu0 0.0
    %591 = vmatpush1.msra.mxu0 0.0
    %592 = vmatprep.subr.mxu0 0.0
    %593 = vmatpush1.msra.mxu0 0.0
    %594 = vmatprep.subr.mxu0 0.0
    %595 = vmatpush1.msra.mxu0 0.0
    %596 = vmatprep.subr.mxu0 0.0
    %597 = vmatpush1.msra.mxu0 0.0
    %598 = vmatprep.subr.mxu0 0.0
    %599 = vmatpush1.msra.mxu0 0.0
    %600 = vmatprep.subr.mxu0 0.0
    %601 = vmatpush1.msra.mxu0 0.0
    %602 = vmatprep.subr.mxu0 0.0
    %603 = vmatpush1.msra.mxu0 0.0
    %604 = vmatprep.subr.mxu0 0.0
    %605 = vmatpush1.msra.mxu0 0.0
    %606 = vmatprep.subr.mxu0 0.0
    %607 = vmatpush1.msra.mxu0 0.0
    %608 = vmatprep.subr.mxu0 0.0
    %609 = vmatpush1.msra.mxu0 0.0
    %610 = vmatprep.subr.mxu0 0.0
    %611 = vmatpush1.msra.mxu0 0.0
    %612 = vmatprep.subr.mxu0 0.0
    %613 = vmatpush1.msra.mxu0 0.0
    %614 = vmatprep.subr.mxu0 0.0
    %615 = vmatpush1.msra.mxu0 0.0
    %616 = vmatprep.subr.mxu0 0.0
    %617 = vmatpush1.msra.mxu0 0.0
    %618 = vmatprep.subr.mxu0 0.0
    %619 = vmatpush1.msra.mxu0 0.0
    %620 = vmatprep.subr.mxu0 0.0
    %621 = vmatpush1.msra.mxu0 0.0
    %622 = vmatprep.subr.mxu0 0.0
    %623 = vmatpush1.msra.mxu0 0.0
    %624 = vmatprep.subr.mxu0 0.0
    %625 = vmatpush1.msra.mxu0 0.0
    %626 = vmatprep.subr.mxu0 0.0
    %627 = vmatpush1.msra.mxu0 0.0
    %628 = vmatprep.subr.mxu0 0.0
    %629 = vmatpush1.msra.mxu0 0.0
    %630 = vmatprep.subr.mxu0 0.0
    %631 = vmatpush1.msra.mxu0 0.0
    %632 = vmatprep.subr.mxu0 0.0
    %633 = vmatpush1.msra.mxu0 0.0
    %634 = vmatprep.subr.mxu0 0.0
    %635 = vmatpush1.msra.mxu0 0.0
    %636 = vmatprep.subr.mxu0 0.0
    %637 = vmatpush1.msra.mxu0 0.0
    %638 = vmatprep.subr.mxu0 0.0
    %639 = vmatpush1.msra.mxu0 0.0
    %640 = vmatprep.subr.mxu0 0.0
    %641 = vmatpush1.msra.mxu0 0.0
    %642 = vmatprep.mubr.f32.mxu0 0.0
    %643 = vmatmul.mubr.f32.gmra.mrb[0].mxu0 %v505
    %v644 = vpop.f32.mrb[0].mxu0
    %v645 = vadd.f32 0.0, %v644
    %v646 = vpop.f32.mrb[0].mxu0
    %v647 = vadd.f32 0.0, %v646
    %648 = vdwg.mxu0
    %649 = vmatprep.subr.mxu0 %v484
    %650 = vmatpush1.msra.mxu0 %v483
    %651 = vmatprep.subr.mxu0 %v490
    %652 = vmatpush1.msra.mxu0 %v489
    %653 = vmatprep.subr.mxu0 %v496
    %654 = vmatpush1.msra.mxu0 %v495
    %655 = vmatprep.subr.mxu0 %v502
    %656 = vmatpush1.msra.mxu0 %v501
    %657 = vmatprep.subr.mxu0 0.0
    %658 = vmatpush1.msra.mxu0 0.0
    %659 = vmatprep.subr.mxu0 0.0
    %660 = vmatpush1.msra.mxu0 0.0
    %661 = vmatprep.subr.mxu0 0.0
    %662 = vmatpush1.msra.mxu0 0.0
    %663 = vmatprep.subr.mxu0 0.0
    %664 = vmatpush1.msra.mxu0 0.0
    %665 = vmatprep.subr.mxu0 0.0
    %666 = vmatpush1.msra.mxu0 0.0
    %667 = vmatprep.subr.mxu0 0.0
    %668 = vmatpush1.msra.mxu0 0.0
    %669 = vmatprep.subr.mxu0 0.0
    %670 = vmatpush1.msra.mxu0 0.0
    %671 = vmatprep.subr.mxu0 0.0
    %672 = vmatpush1.msra.mxu0 0.0
    %673 = vmatprep.subr.mxu0 0.0
    %674 = vmatpush1.msra.mxu0 0.0
    %675 = vmatprep.subr.mxu0 0.0
    %676 = vmatpush1.msra.mxu0 0.0
    %677 = vmatprep.subr.mxu0 0.0
    %678 = vmatpush1.msra.mxu0 0.0
    %679 = vmatprep.subr.mxu0 0.0
    %680 = vmatpush1.msra.mxu0 0.0
    %681 = vmatprep.subr.mxu0 0.0
    %682 = vmatpush1.msra.mxu0 0.0
    %683 = vmatprep.subr.mxu0 0.0
    %684 = vmatpush1.msra.mxu0 0.0
    %685 = vmatprep.subr.mxu0 0.0
    %686 = vmatpush1.msra.mxu0 0.0
    %687 = vmatprep.subr.mxu0 0.0
    %688 = vmatpush1.msra.mxu0 0.0
    %689 = vmatprep.subr.mxu0 0.0
    %690 = vmatpush1.msra.mxu0 0.0
    %691 = vmatprep.subr.mxu0 0.0
    %692 = vmatpush1.msra.mxu0 0.0
    %693 = vmatprep.subr.mxu0 0.0
    %694 = vmatpush1.msra.mxu0 0.0
    %695 = vmatprep.subr.mxu0 0.0
    %696 = vmatpush1.msra.mxu0 0.0
    %697 = vmatprep.subr.mxu0 0.0
    %698 = vmatpush1.msra.mxu0 0.0
    %699 = vmatprep.subr.mxu0 0.0
    %700 = vmatpush1.msra.mxu0 0.0
    %701 = vmatprep.subr.mxu0 0.0
    %702 = vmatpush1.msra.mxu0 0.0
    %703 = vmatprep.subr.mxu0 0.0
    %704 = vmatpush1.msra.mxu0 0.0
    %705 = vmatprep.subr.mxu0 0.0
    %706 = vmatpush1.msra.mxu0 0.0
    %707 = vmatprep.subr.mxu0 0.0
    %708 = vmatpush1.msra.mxu0 0.0
    %709 = vmatprep.subr.mxu0 0.0
    %710 = vmatpush1.msra.mxu0 0.0
    %711 = vmatprep.subr.mxu0 0.0
    %712 = vmatpush1.msra.mxu0 0.0
    %713 = vmatprep.mubr.f32.mxu0 0.0
    %714 = vmatmul.mubr.f32.gmra.mrb[0].mxu0 %v505
    %v715 = vpop.f32.mrb[0].mxu0
    %v716 = vadd.f32 0.0, %v715
    %v717 = vpop.f32.mrb[0].mxu0
    %v718 = vadd.f32 0.0, %v717
    %719 = vdwg.mxu0
    %v720 = vmax.f32 %v574, 0.0
    %v721 = vmax.f32 %v576, 0.0
    %v722 = vmax.f32 %v645, 0.0
    %v723 = vmax.f32 %v647, 0.0
    %v724 = vmax.f32 %v716, 0.0
    %v725 = vmax.f32 %v718, 0.0
    %726 = vst [vmem:[#allocation3] sm:$0xff] %v720
    %727 = vst [vmem:[#allocation3 + $0x8] sm:$0xff] %v721
    %728 = vst [vmem:[#allocation3 + $0x10] sm:$0xff] %v722
    %729 = vst [vmem:[#allocation3 + $0x18] sm:$0xff] %v723
    %730 = vst [vmem:[#allocation3 + $0x20] sm:$0xff] %v724
    %731 = vst [vmem:[#allocation3 + $0x28] sm:$0xff] %v725
    // Predicated region
    $region10: #{tpu_custom_call.1} parent=1 // pred_check
      _
    $region11: #{tpu_custom_call.1} parent=1 // pred_check_branch
      %733 = sbr.rel (0) target = $region13
    $region12: #{tpu_custom_call.1} parent=1 // pred_region
      %s735 = ssub.s32 768, 768
      %736 = vsyncadd [#allocation4], %s735
      %s738 = sshll.u32 [#allocation3], 4
      %s739 = int_to_ptr.vmem [resolvable:$true] %s738
      %741 = dma.vmem_to_hbm [thread:$0]  %s739, 768, %s2, [#allocation4]
    $region13: #{tpu_custom_call.1} parent=1 // pred_fallthru
      _
    // Predicated region
    $region14: #{tpu_custom_call.1} parent=1 // pred_check
      _
    $region15: #{tpu_custom_call.1} parent=1 // pred_check_branch
      %743 = sbr.rel (0) target = $region17
    $region16: #{tpu_custom_call.1} parent=1 // pred_region
      %744 = dma.done [#allocation4], 768
    $region17: #{tpu_custom_call.1} parent=1 // pred_fallthru
      _
    %745 = vsyncpa [#allocation4], 1

</llo_original>
